<compile_context>
chip_gen: v7x
topology: tpu7x:2x2x1
jax: 0.10.0
libtpu: 0.0.40
codegen_flags: <defaults>
</compile_context>

<pallas_src>
import jax
import jax.numpy as jnp
from jax.experimental import pallas as pl
from jax.experimental.pallas import tpu as pltpu


LANE = 128       # lane width: hidden/output feature dims padded to this
_SUBLANE = 8


def _round_up(x, m):
    return ((x + m - 1) // m) * m


# ------------------------------- kernel ------------------------------------


def _make_mlp_kernel(n_layers):
    """Kernel refs: (x, w0, b0, w1, b1, ..., out).

    Conv1d(k=1) and eval-mode BatchNorm were folded into W/b in the wrapper,
    so per layer the body is: bf16 matmul on the MXU with f32 accumulation,
    f32 bias add, ReLU. Everything stays in vregs/VMEM between layers.
    """

    def kernel(*refs):
        x_ref = refs[0]
        o_ref = refs[1 + 2 * n_layers]

        h = x_ref[...].astype(jnp.float32)
        for li in range(n_layers):
            w_ref = refs[1 + 2 * li]                # bf16 [H_in_p, H_out_p]
            b_ref = refs[2 + 2 * li]                # f32  [1,      H_out_p]
            # bf16 operands feed the MXU natively on v5e/v6e/v7x; keep the
            # accumulator and the elementwise tail in f32.
            h = jnp.dot(h.astype(jnp.bfloat16), w_ref[...],
                        preferred_element_type=jnp.float32)
            h = jnp.maximum(h + b_ref[...], 0.0)    # folded-bias + ReLU
        o_ref[...] = h.astype(o_ref.dtype)

    return kernel


# ------------------------------ wrapper -------------------------------------


def _pick_batch_tile(batch, max_dim, io_itemsize, weight_bytes,
                     *, target_bytes=4 << 20, vmem_budget=24 << 20):
    """Batch-tile rows: multiple of 8, ~4 MiB of activation per grid step,
    >= 4 grid steps when the batch allows (2 per v7x TensorCore), and the
    whole working set (2x in tile + 2x out tile + live f32 intermediates +
    resident weights) inside a conservative budget valid on v5e/v6e/v7x."""
    if batch <= _SUBLANE:
        return max(batch, 1)
    tb = min(batch, max(_SUBLANE, target_bytes // max(max_dim * io_itemsize, 1)))
    if batch >= 4 * _SUBLANE:
        tb = min(tb, pl.cdiv(batch, 4))             # >= 4 steps -> 2 per v7x core
    per_row = 2 * max_dim * io_itemsize             # x tile, double-buffered
    per_row += 2 * max_dim * io_itemsize            # out tile, double-buffered
    per_row += 3 * max_dim * 4                      # live f32 intermediates (est.)
    avail = max(vmem_budget - weight_bytes, 1 << 20)
    tb = min(tb, max(_SUBLANE, avail // per_row))
    tb = max(_SUBLANE, (tb // _SUBLANE) * _SUBLANE)
    return min(tb, (batch // _SUBLANE) * _SUBLANE)


def mlp_forward(x, params, *, eps=1e-5, batch_tile=None):
    """Fused MLP forward. x: [B, H0] -> [B, 1, H_last] (matches PyTorch)."""
    x = jnp.asarray(x)
    B, H0 = x.shape
    n_layers = len(params)
    assert int(params[0]["w"].shape[0]) == H0

    # ---- Fold Conv1d(1,1,k=1) + eval BatchNorm1d(C=1) into W / b ----------
    #   y = bn_scale*((cw*h + cb) @ W + b) + bn_shift
    #     = h @ (cw*bn_scale*W) + (bn_scale*(b + cb*colsum(W)) + bn_shift)
    ws, bs, out_dims = [], [], []
    for p in params:
        w = p["w"].astype(jnp.float32)
        b = p["b"].astype(jnp.float32)
        bn_scale = p["gamma"].astype(jnp.float32) / jnp.sqrt(
            p["var"].astype(jnp.float32) + eps)
        bn_shift = (p["beta"].astype(jnp.float32)
                    - p["mean"].astype(jnp.float32) * bn_scale)
        w_f = (p["conv_w"].astype(jnp.float32) * bn_scale) * w
        b_f = bn_scale * (b + p["conv_b"].astype(jnp.float32)
                          * jnp.sum(w, axis=0)) + bn_shift
        ws.append(w_f)
        bs.append(b_f)
        out_dims.append(int(w.shape[1]))

    # ---- Pad hidden/output feature dims to 128 lanes ------------------------
    # Unmasked (lane-dense) stores and a well-fed MXU. Zero-padded columns stay
    # zero through bias+ReLU and feed zero rows of the next layer, so results
    # are unchanged; the wrapper slices back at the end. H0 is left unpadded
    # (full-dim block) to avoid an extra copy of the streamed activations.
    H_last = out_dims[-1]
    pad_dims = [H0] + [_round_up(d, LANE) for d in out_dims]
    ws_p, bs_p = [], []
    for li, (w_f, b_f) in enumerate(zip(ws, bs)):
        h_in_p, h_out_p = pad_dims[li], pad_dims[li + 1]
        w_p = jnp.zeros((h_in_p, h_out_p), jnp.float32)
        w_p = w_p.at[:w_f.shape[0], :w_f.shape[1]].set(w_f)
        b_p = jnp.zeros((1, h_out_p), jnp.float32)
        b_p = b_p.at[0, :b_f.shape[0]].set(b_f)
        ws_p.append(w_p.astype(jnp.bfloat16))       # bf16: native MXU operand
        bs_p.append(b_p)                            # bias stays f32
    H_last_p = pad_dims[-1]

    # ---- Tiling / VMEM budget ----------------------------------------------
    w_bytes = sum(int(w.size) * 2 + int(b.size) * 4 for w, b in zip(ws_p, bs_p))
    max_dim = max(pad_dims)
    io_itemsize = x.dtype.itemsize            # streamed x/out keep caller dtype
    tb = int(batch_tile) if batch_tile is not None else _pick_batch_tile(
        B, max_dim, io_itemsize, w_bytes)
    grid = (pl.cdiv(B, tb),)                  # partial last block handled by Pallas

    def _vmem_limit(n_weight_bufs):
        need = 2 * tb * H0 * io_itemsize              # x tile (double-buffered)
        need += 2 * tb * H_last_p * io_itemsize       # out tile (double-buffered)
        need += 3 * tb * max_dim * 4                  # live f32 intermediates
        need += n_weight_bufs * w_bytes               # resident weights / biases
        need += 4 << 20                               # headroom
        return int(min(max(need, 16 << 20), 56 << 20))

    # Advisory cost: memory-bound streaming + small matmuls.
    flops = 0
    for li in range(n_layers):
        flops += 2 * B * pad_dims[li] * pad_dims[li + 1]     # MXU
        flops += 2 * B * pad_dims[li + 1]                    # bias + relu
    bytes_accessed = (B * H0 + B * H_last_p) * io_itemsize + w_bytes
    cost = pl.CostEstimate(flops=int(flops), transcendentals=0,
                           bytes_accessed=int(bytes_accessed))

    def _run(single_buffer_weights):
        in_specs = [pl.BlockSpec((tb, H0), lambda i: (i, 0))]
        operands = [x]
        for w_p, b_p in zip(ws_p, bs_p):
            if single_buffer_weights:
                # Constant index map -> DMA'd once and revisited; a single
                # buffer halves the resident-weight VMEM (matters most on
                # v7x's 64 MiB VMEM and v5e's 16 MiB scoped default).
                w_spec = pl.BlockSpec(w_p.shape, lambda i: (0, 0),
                                      pipeline_mode=pl.Buffered(1))
                b_spec = pl.BlockSpec(b_p.shape, lambda i: (0, 0),
                                      pipeline_mode=pl.Buffered(1))
            else:
                w_spec = pl.BlockSpec(w_p.shape, lambda i: (0, 0))
                b_spec = pl.BlockSpec(b_p.shape, lambda i: (0, 0))
            in_specs += [w_spec, b_spec]
            operands += [w_p, b_p]
        out_spec = pl.BlockSpec((tb, H_last_p), lambda i: (i, 0))

        return pl.pallas_call(
            _make_mlp_kernel(n_layers),
            out_shape=jax.ShapeDtypeStruct((B, H_last_p), x.dtype),
            grid_spec=pltpu.PrefetchScalarGridSpec(
                num_scalar_prefetch=0,
                grid=grid,
                in_specs=in_specs,
                out_specs=out_spec,
            ),
            compiler_params=pltpu.CompilerParams(
                dimension_semantics=("parallel",),
                vmem_limit_bytes=_vmem_limit(1 if single_buffer_weights else 2),
            ),
            cost_estimate=cost,
        )(*operands)

    try:
        out = _run(True)
    except Exception:
        # Fallback for jax versions that reject Buffered(1) on resident
        # blocks: identical kernel, default double-buffered weights.
        out = _run(False)

    out = out[:, :H_last]                     # drop lane padding
    return out[:, None, :]                    # [B, channel_num=1, H_last]


# ----------------------------- reference ------------------------------------


def init_mlp_params(key, layers, dtype=jnp.float32):
    params = []
    for h_in, h_out in zip(layers[:-1], layers[1:]):
        key, k1, k2, k3, k4, k5, k6, k7 = jax.random.split(key, 8)
        params.append(dict(
            w=jax.random.normal(k1, (h_in, h_out), dtype) * 0.05,   # Linear W^T
            b=jax.random.normal(k2, (h_out,), dtype) * 0.05,
            conv_w=jax.random.normal(k3, (), dtype) * 0.3 + 1.0,    # Conv1d k=1
            conv_b=jax.random.normal(k4, (), dtype) * 0.1,
            gamma=jax.random.normal(k5, (), dtype) * 0.1 + 1.0,     # BN weight
            beta=jax.random.normal(k6, (), dtype) * 0.1,            # BN bias
            mean=jax.random.normal(k7, (), dtype) * 0.05,           # running_mean
            var=jnp.ones((), dtype),                                # running_var
        ))
    return params


def mlp_reference(x, params, eps=1e-5):
    """Unfused f32 reference with the original (unfolded) op order."""
    h = x.astype(jnp.float32)
    for p in params:
        h = h * p["conv_w"] + p["conv_b"]
        h = jnp.dot(h, p["w"]) + p["b"].reshape(1, -1)
        h = (h - p["mean"]) / jnp.sqrt(p["var"] + eps) * p["gamma"] + p["beta"]
        h = jnp.maximum(h, 0.0)
    return h[:, None, :]


# -------------------------------- main --------------------------------------


if __name__ == "__main__":
    key = jax.random.PRNGKey(0)
    B = 128
    layers = [64, 128, 128]                         # lane-dense output (128)

    kx, kp = jax.random.split(key)
    x = jax.random.normal(kx, (B, layers[0]), dtype=jnp.float32)
    params = init_mlp_params(kp, layers)

    out = mlp_forward(x, params)
    out = jax.block_until_ready(out)

    ref = mlp_reference(x, params)
    assert out.shape == (B, 1, layers[-1]), out.shape
    # Tolerance covers bf16 MXU operands (f32 accumulate) and the conv/BN
    # fold's slightly different rounding order vs the f32 XLA reference.
    assert jnp.allclose(out, ref, atol=2e-2, rtol=2e-2), (
        "mismatch vs reference, max abs err = %g"
        % float(jnp.max(jnp.abs(out - ref))))
    print("KERNEL_OK")
</pallas_src>

<mosaic_0001>
module attributes {stable_mosaic.version = 11 : i64} {
  func.func @kernel(%arg0: i32, %arg1: memref<32x64xf32, #tpu.memory_space<vmem>>, %arg2: memref<64x128xbf16, #tpu.memory_space<vmem>>, %arg3: memref<1x128xf32, #tpu.memory_space<vmem>>, %arg4: memref<128x128xbf16, #tpu.memory_space<vmem>>, %arg5: memref<1x128xf32, #tpu.memory_space<vmem>>, %arg6: memref<32x128xf32, #tpu.memory_space<vmem>>) attributes {dimension_semantics = [#tpu.dimension_semantics<parallel>], iteration_bounds = array<i64: 4>, scalar_prefetch = 0 : i64, scratch_operands = 0 : i64, tpu.core_type = #tpu.core_type<tc>, window_params = [{transform_indices = @transform_0, window_bounds = array<i64: 32, 64>}, {pipeline_mode = #tpu.pipeline_mode<synchronous>, transform_indices = @transform_1, window_bounds = array<i64: 64, 128>}, {pipeline_mode = #tpu.pipeline_mode<synchronous>, transform_indices = @transform_2, window_bounds = array<i64: 1, 128>}, {pipeline_mode = #tpu.pipeline_mode<synchronous>, transform_indices = @transform_3, window_bounds = array<i64: 128, 128>}, {pipeline_mode = #tpu.pipeline_mode<synchronous>, transform_indices = @transform_4, window_bounds = array<i64: 1, 128>}, {transform_indices = @transform_5, window_bounds = array<i64: 32, 128>}]} {
    %c0 = arith.constant 0 : index
    %c0_0 = arith.constant 0 : index
    %0 = vector.load %arg1[%c0, %c0_0] : memref<32x64xf32, #tpu.memory_space<vmem>>, vector<32x64xf32>
    %1 = arith.truncf %0 : vector<32x64xf32> to vector<32x64xbf16>
    %c0_1 = arith.constant 0 : index
    %c0_2 = arith.constant 0 : index
    %2 = vector.load %arg2[%c0_1, %c0_2] : memref<64x128xbf16, #tpu.memory_space<vmem>>, vector<64x128xbf16>
    %cst = arith.constant dense<0.000000e+00> : vector<32x128xf32>
    %3 = tpu.matmul %1, %2, %cst {dimension_numbers = #tpu.dot_dimension_numbers<[1], [0], [0], [1], [0, 0, 1, 1], [], []>} : vector<32x64xbf16>, vector<64x128xbf16>, vector<32x128xf32> -> vector<32x128xf32>
    %c0_3 = arith.constant 0 : index
    %c0_4 = arith.constant 0 : index
    %4 = vector.load %arg3[%c0_3, %c0_4] : memref<1x128xf32, #tpu.memory_space<vmem>>, vector<1x128xf32>
    %5 = vector.broadcast %4 : vector<1x128xf32> to vector<32x128xf32>
    %6 = arith.addf %3, %5 : vector<32x128xf32>
    %cst_5 = arith.constant 0.000000e+00 : f32
    %7 = vector.broadcast %cst_5 : f32 to vector<32x128xf32>
    %8 = arith.maximumf %6, %7 : vector<32x128xf32>
    %9 = arith.truncf %8 : vector<32x128xf32> to vector<32x128xbf16>
    %c0_6 = arith.constant 0 : index
    %c0_7 = arith.constant 0 : index
    %10 = vector.load %arg4[%c0_6, %c0_7] : memref<128x128xbf16, #tpu.memory_space<vmem>>, vector<128x128xbf16>
    %cst_8 = arith.constant dense<0.000000e+00> : vector<32x128xf32>
    %11 = tpu.matmul %9, %10, %cst_8 {dimension_numbers = #tpu.dot_dimension_numbers<[1], [0], [0], [1], [0, 0, 1, 1], [], []>} : vector<32x128xbf16>, vector<128x128xbf16>, vector<32x128xf32> -> vector<32x128xf32>
    %c0_9 = arith.constant 0 : index
    %c0_10 = arith.constant 0 : index
    %12 = vector.load %arg5[%c0_9, %c0_10] : memref<1x128xf32, #tpu.memory_space<vmem>>, vector<1x128xf32>
    %13 = vector.broadcast %12 : vector<1x128xf32> to vector<32x128xf32>
    %14 = arith.addf %11, %13 : vector<32x128xf32>
    %cst_11 = arith.constant 0.000000e+00 : f32
    %15 = vector.broadcast %cst_11 : f32 to vector<32x128xf32>
    %16 = arith.maximumf %14, %15 : vector<32x128xf32>
    %c0_12 = arith.constant 0 : index
    %c0_13 = arith.constant 0 : index
    %17 = vector.load %arg6[%c0_12, %c0_13] : memref<32x128xf32, #tpu.memory_space<vmem>>, vector<32x128xf32>
    tpu.vector_store %arg6[%c0_12, %c0_13], %16 {strides = array<i32>} : memref<32x128xf32, #tpu.memory_space<vmem>>, vector<32x128xf32>,
    return
  }
  func.func @transform_0(%arg0: i32) -> (i32, i32) {
    %c0_i32 = arith.constant 0 : i32
    %c0_i32_0 = arith.constant 0 : i32
    return %arg0, %c0_i32 : i32, i32
  }
  func.func @transform_1(%arg0: i32) -> (i32, i32) {
    %c0_i32 = arith.constant 0 : i32
    %c0_i32_0 = arith.constant 0 : i32
    %c0_i32_1 = arith.constant 0 : i32
    return %c0_i32, %c0_i32_0 : i32, i32
  }
  func.func @transform_2(%arg0: i32) -> (i32, i32) {
    %c0_i32 = arith.constant 0 : i32
    %c0_i32_0 = arith.constant 0 : i32
    %c0_i32_1 = arith.constant 0 : i32
    return %c0_i32, %c0_i32_0 : i32, i32
  }
  func.func @transform_3(%arg0: i32) -> (i32, i32) {
    %c0_i32 = arith.constant 0 : i32
    %c0_i32_0 = arith.constant 0 : i32
    %c0_i32_1 = arith.constant 0 : i32
    return %c0_i32, %c0_i32_0 : i32, i32
  }
  func.func @transform_4(%arg0: i32) -> (i32, i32) {
    %c0_i32 = arith.constant 0 : i32
    %c0_i32_0 = arith.constant 0 : i32
    %c0_i32_1 = arith.constant 0 : i32
    return %c0_i32, %c0_i32_0 : i32, i32
  }
  func.func @transform_5(%arg0: i32) -> (i32, i32) {
    %c0_i32 = arith.constant 0 : i32
    %c0_i32_0 = arith.constant 0 : i32
    return %arg0, %c0_i32 : i32, i32
  }
}

module attributes {stable_mosaic.version = 11 : i64} {
  func.func @kernel(%arg0: i32, %arg1: memref<32x64xf32, #tpu.memory_space<vmem>>, %arg2: memref<64x128xbf16, #tpu.memory_space<vmem>>, %arg3: memref<1x128xf32, #tpu.memory_space<vmem>>, %arg4: memref<128x128xbf16, #tpu.memory_space<vmem>>, %arg5: memref<1x128xf32, #tpu.memory_space<vmem>>, %arg6: memref<32x128xf32, #tpu.memory_space<vmem>>) attributes {dimension_semantics = [#tpu.dimension_semantics<parallel>], iteration_bounds = array<i64: 4>, scalar_prefetch = 0 : i64, scratch_operands = 0 : i64, tpu.core_type = #tpu.core_type<tc>, window_params = [{transform_indices = @transform_0, window_bounds = array<i64: 32, 64>}, {pipeline_mode = #tpu.pipeline_mode<synchronous>, transform_indices = @transform_1, window_bounds = array<i64: 64, 128>}, {pipeline_mode = #tpu.pipeline_mode<synchronous>, transform_indices = @transform_2, window_bounds = array<i64: 1, 128>}, {pipeline_mode = #tpu.pipeline_mode<synchronous>, transform_indices = @transform_3, window_bounds = array<i64: 128, 128>}, {pipeline_mode = #tpu.pipeline_mode<synchronous>, transform_indices = @transform_4, window_bounds = array<i64: 1, 128>}, {transform_indices = @transform_5, window_bounds = array<i64: 32, 128>}]} {
    %c0 = arith.constant 0 : index
    %c0_0 = arith.constant 0 : index
    %0 = vector.load %arg1[%c0, %c0_0] : memref<32x64xf32, #tpu.memory_space<vmem>>, vector<32x64xf32>
    %1 = arith.truncf %0 : vector<32x64xf32> to vector<32x64xbf16>
    %c0_1 = arith.constant 0 : index
    %c0_2 = arith.constant 0 : index
    %2 = vector.load %arg2[%c0_1, %c0_2] : memref<64x128xbf16, #tpu.memory_space<vmem>>, vector<64x128xbf16>
    %cst = arith.constant dense<0.000000e+00> : vector<32x128xf32>
    %3 = tpu.matmul %1, %2, %cst {dimension_numbers = #tpu.dot_dimension_numbers<[1], [0], [0], [1], [0, 0, 1, 1], [], []>} : vector<32x64xbf16>, vector<64x128xbf16>, vector<32x128xf32> -> vector<32x128xf32>
    %c0_3 = arith.constant 0 : index
    %c0_4 = arith.constant 0 : index
    %4 = vector.load %arg3[%c0_3, %c0_4] : memref<1x128xf32, #tpu.memory_space<vmem>>, vector<1x128xf32>
    %5 = vector.broadcast %4 : vector<1x128xf32> to vector<32x128xf32>
    %6 = arith.addf %3, %5 : vector<32x128xf32>
    %cst_5 = arith.constant 0.000000e+00 : f32
    %7 = vector.broadcast %cst_5 : f32 to vector<32x128xf32>
    %8 = arith.maximumf %6, %7 : vector<32x128xf32>
    %9 = arith.truncf %8 : vector<32x128xf32> to vector<32x128xbf16>
    %c0_6 = arith.constant 0 : index
    %c0_7 = arith.constant 0 : index
    %10 = vector.load %arg4[%c0_6, %c0_7] : memref<128x128xbf16, #tpu.memory_space<vmem>>, vector<128x128xbf16>
    %cst_8 = arith.constant dense<0.000000e+00> : vector<32x128xf32>
    %11 = tpu.matmul %9, %10, %cst_8 {dimension_numbers = #tpu.dot_dimension_numbers<[1], [0], [0], [1], [0, 0, 1, 1], [], []>} : vector<32x128xbf16>, vector<128x128xbf16>, vector<32x128xf32> -> vector<32x128xf32>
    %c0_9 = arith.constant 0 : index
    %c0_10 = arith.constant 0 : index
    %12 = vector.load %arg5[%c0_9, %c0_10] : memref<1x128xf32, #tpu.memory_space<vmem>>, vector<1x128xf32>
    %13 = vector.broadcast %12 : vector<1x128xf32> to vector<32x128xf32>
    %14 = arith.addf %11, %13 : vector<32x128xf32>
    %cst_11 = arith.constant 0.000000e+00 : f32
    %15 = vector.broadcast %cst_11 : f32 to vector<32x128xf32>
    %16 = arith.maximumf %14, %15 : vector<32x128xf32>
    %c0_12 = arith.constant 0 : index
    %c0_13 = arith.constant 0 : index
    %17 = vector.load %arg6[%c0_12, %c0_13] : memref<32x128xf32, #tpu.memory_space<vmem>>, vector<32x128xf32>
    tpu.vector_store %arg6[%c0_12, %c0_13], %16 {strides = array<i32>} : memref<32x128xf32, #tpu.memory_space<vmem>>, vector<32x128xf32>,
    return
  }
  func.func @transform_0(%arg0: i32) -> (i32, i32) {
    %c0_i32 = arith.constant 0 : i32
    %c0_i32_0 = arith.constant 0 : i32
    return %arg0, %c0_i32 : i32, i32
  }
  func.func @transform_1(%arg0: i32) -> (i32, i32) {
    %c0_i32 = arith.constant 0 : i32
    %c0_i32_0 = arith.constant 0 : i32
    %c0_i32_1 = arith.constant 0 : i32
    return %c0_i32, %c0_i32_0 : i32, i32
  }
  func.func @transform_2(%arg0: i32) -> (i32, i32) {
    %c0_i32 = arith.constant 0 : i32
    %c0_i32_0 = arith.constant 0 : i32
    %c0_i32_1 = arith.constant 0 : i32
    return %c0_i32, %c0_i32_0 : i32, i32
  }
  func.func @transform_3(%arg0: i32) -> (i32, i32) {
    %c0_i32 = arith.constant 0 : i32
    %c0_i32_0 = arith.constant 0 : i32
    %c0_i32_1 = arith.constant 0 : i32
    return %c0_i32, %c0_i32_0 : i32, i32
  }
  func.func @transform_4(%arg0: i32) -> (i32, i32) {
    %c0_i32 = arith.constant 0 : i32
    %c0_i32_0 = arith.constant 0 : i32
    %c0_i32_1 = arith.constant 0 : i32
    return %c0_i32, %c0_i32_0 : i32, i32
  }
  func.func @transform_5(%arg0: i32) -> (i32, i32) {
    %c0_i32 = arith.constant 0 : i32
    %c0_i32_0 = arith.constant 0 : i32
    return %arg0, %c0_i32 : i32, i32
  }
}

</mosaic_0001>

<llo_original>
// kernel: tpu_custom_call.1
$region0: #{tpu_custom_call.1}
  #allocation0 [shape = 'u32[]', space=smem, size = 0x4, offset = 0x4, fixed_abs, tag = 'smem constant byte address 0x4 - core index']
  #allocation1 [shape = 'u32[144,128]{1,0:T(1,128)}', space=vmem, size = 0x12000, scoped, tag = 'internal scratch']
  %s0 = inlined_call_operand.vmem [shape: f32[128,64], index: 0, kind: input, shape index: {}]
  %s1 = inlined_call_operand.vmem [shape: bf16[64,128], index: 1, kind: input, shape index: {}]
  %s2 = inlined_call_operand.vmem [shape: f32[1,128], index: 2, kind: input, shape index: {}]
  %s3 = inlined_call_operand.vmem [shape: bf16[128,128], index: 3, kind: input, shape index: {}]
  %s4 = inlined_call_operand.vmem [shape: f32[1,128], index: 4, kind: input, shape index: {}]
  %s5 = inlined_call_operand.hbm [shape: f32[128,128], index: 5, kind: output, shape index: {}]
  %s6 = sld [smem:[#allocation0]]
  $region53: #{tpu_custom_call.1} parent=0
    _
  %s8 = ssub.s32 1, %s6
  %s9 = scalar_select 0, %s8, %s6
  $region1: #{tpu_custom_call.1} parent=0
    #allocation2 [shape = 'u8[32768]{0}', space=vmem, size = 0x8000, scoped, tag = 'output window, operand 0']
    #allocation3 [shape = 's32[2]{0}', space=sflag, size = 0x8, scoped, tag = 'scoped memory for tpu_custom_call.1']
    %10 = vsyncpa [#allocation3], 0
    %s11 = scalar_lea.sflag [#allocation3], 1
    %12 = vsyncpa %s11, 0
    loop: start=0, step=1, limit=6
    $region2: #{tpu_custom_call.1} parent=1 // loop_pre_header
      _
    $region3: #{tpu_custom_call.1} parent=1 // loop_header
      %s14 = sphi 0, %s18
      %p15 = scmp.ge.s32.totalorder %s14, 6
      %s24 = sphi 0, %s26
      %s27 = sphi 0, %s24
      %s28 = sphi 0, %s27
      %s44 = sphi 0, %s28
      %s48 = sphi 0, %s48
      %s50 = sphi 0, %s48
      %s51 = sphi 0, %s50
      %s65 = sphi 0, %s51
      %s69 = sphi 0, %s69
      %s71 = sphi 0, %s69
      %s72 = sphi 0, %s71
      %s86 = sphi 0, %s72
      %s90 = sphi 0, %s90
      %s92 = sphi 0, %s90
      %s93 = sphi 0, %s92
      %s107 = sphi 0, %s93
      %s111 = sphi 0, %s111
      %s113 = sphi 0, %s111
      %s114 = sphi 0, %s113
      %s128 = sphi 0, %s114
      %s134 = sphi 0, %s136
      %s137 = sphi 0, %s134
      %s138 = sphi 0, %s137
      %s154 = sphi 0, %s138
    $region4: #{tpu_custom_call.1} parent=1 // loop_header_branch
      %17 = sbr.rel (%p15) target = $region8
    $region5: #{tpu_custom_call.1} parent=1 // loop_body
      %s19 = ssub.s32 %s14, 1
      %s20 = ssub.s32 %s14, 2
      %s21 = sadd.s32 %s14, 1
      %s22 = ssub.s32 %s14, %s21
      %p23 = scmp.eq.s32.totalorder %s22, 0
      %s25 = sadd.s32 %s24, 1
      %s26 = scalar_select %p23, %s24, %s25
      %p29 = pneg %p23
      %p30 = scmp.eq.s32.totalorder %s14, 3
      %p31 = por %p29, %p30
      %p32 = scmp.ne.s32.totalorder %s24, %s27
      %p33 = scmp.eq.s32.totalorder %s14, 0
      %p34 = por %p32, %p33
      %p35 = scmp.ne.s32.totalorder %s24, %s27
      %p36 = scmp.eq.s32.totalorder %s19, 3
      %p37 = por %p35, %p36
      %p38 = scmp.ne.s32.totalorder %s27, %s28
      %p39 = scmp.eq.s32.totalorder %s19, 0
      %p40 = por %p38, %p39
      %p41 = scmp.ne.s32.totalorder %s27, %s28
      %p42 = scmp.eq.s32.totalorder %s20, 3
      %p43 = por %p41, %p42
      %p45 = scmp.ne.s32.totalorder %s28, %s44
      %p46 = scmp.eq.s32.totalorder %s20, 0
      %p47 = por %p45, %p46
      %s49 = sadd.s32 %s48, 1
      %p52 = scmp.eq.s32.totalorder %s14, 3
      %p53 = scmp.ne.s32.totalorder %s48, %s50
      %p54 = scmp.eq.s32.totalorder %s14, 0
      %p55 = por %p53, %p54
      %p56 = scmp.ne.s32.totalorder %s48, %s50
      %p57 = scmp.eq.s32.totalorder %s19, 3
      %p58 = por %p56, %p57
      %p59 = scmp.ne.s32.totalorder %s50, %s51
      %p60 = scmp.eq.s32.totalorder %s19, 0
      %p61 = por %p59, %p60
      %p62 = scmp.ne.s32.totalorder %s50, %s51
      %p63 = scmp.eq.s32.totalorder %s20, 3
      %p64 = por %p62, %p63
      %p66 = scmp.ne.s32.totalorder %s51, %s65
      %p67 = scmp.eq.s32.totalorder %s20, 0
      %p68 = por %p66, %p67
      %s70 = sadd.s32 %s69, 1
      %p73 = scmp.eq.s32.totalorder %s14, 3
      %p74 = scmp.ne.s32.totalorder %s69, %s71
      %p75 = scmp.eq.s32.totalorder %s14, 0
      %p76 = por %p74, %p75
      %p77 = scmp.ne.s32.totalorder %s69, %s71
      %p78 = scmp.eq.s32.totalorder %s19, 3
      %p79 = por %p77, %p78
      %p80 = scmp.ne.s32.totalorder %s71, %s72
      %p81 = scmp.eq.s32.totalorder %s19, 0
      %p82 = por %p80, %p81
      %p83 = scmp.ne.s32.totalorder %s71, %s72
      %p84 = scmp.eq.s32.totalorder %s20, 3
      %p85 = por %p83, %p84
      %p87 = scmp.ne.s32.totalorder %s72, %s86
      %p88 = scmp.eq.s32.totalorder %s20, 0
      %p89 = por %p87, %p88
      %s91 = sadd.s32 %s90, 1
      %p94 = scmp.eq.s32.totalorder %s14, 3
      %p95 = scmp.ne.s32.totalorder %s90, %s92
      %p96 = scmp.eq.s32.totalorder %s14, 0
      %p97 = por %p95, %p96
      %p98 = scmp.ne.s32.totalorder %s90, %s92
      %p99 = scmp.eq.s32.totalorder %s19, 3
      %p100 = por %p98, %p99
      %p101 = scmp.ne.s32.totalorder %s92, %s93
      %p102 = scmp.eq.s32.totalorder %s19, 0
      %p103 = por %p101, %p102
      %p104 = scmp.ne.s32.totalorder %s92, %s93
      %p105 = scmp.eq.s32.totalorder %s20, 3
      %p106 = por %p104, %p105
      %p108 = scmp.ne.s32.totalorder %s93, %s107
      %p109 = scmp.eq.s32.totalorder %s20, 0
      %p110 = por %p108, %p109
      %s112 = sadd.s32 %s111, 1
      %p115 = scmp.eq.s32.totalorder %s14, 3
      %p116 = scmp.ne.s32.totalorder %s111, %s113
      %p117 = scmp.eq.s32.totalorder %s14, 0
      %p118 = por %p116, %p117
      %p119 = scmp.ne.s32.totalorder %s111, %s113
      %p120 = scmp.eq.s32.totalorder %s19, 3
      %p121 = por %p119, %p120
      %p122 = scmp.ne.s32.totalorder %s113, %s114
      %p123 = scmp.eq.s32.totalorder %s19, 0
      %p124 = por %p122, %p123
      %p125 = scmp.ne.s32.totalorder %s113, %s114
      %p126 = scmp.eq.s32.totalorder %s20, 3
      %p127 = por %p125, %p126
      %p129 = scmp.ne.s32.totalorder %s114, %s128
      %p130 = scmp.eq.s32.totalorder %s20, 0
      %p131 = por %p129, %p130
      %s132 = ssub.s32 %s14, %s21
      %p133 = scmp.eq.s32.totalorder %s132, 0
      %s135 = sadd.s32 %s134, 1
      %s136 = scalar_select %p133, %s134, %s135
      %p139 = pneg %p133
      %p140 = scmp.eq.s32.totalorder %s14, 3
      %p141 = por %p139, %p140
      %p142 = scmp.ne.s32.totalorder %s134, %s137
      %p143 = scmp.eq.s32.totalorder %s14, 0
      %p144 = por %p142, %p143
      %p145 = scmp.ne.s32.totalorder %s134, %s137
      %p146 = scmp.eq.s32.totalorder %s19, 3
      %p147 = por %p145, %p146
      %p148 = scmp.ne.s32.totalorder %s137, %s138
      %p149 = scmp.eq.s32.totalorder %s19, 0
      %p150 = por %p148, %p149
      %p151 = scmp.ne.s32.totalorder %s137, %s138
      %p152 = scmp.eq.s32.totalorder %s20, 3
      %p153 = por %p151, %p152
      %p155 = scmp.ne.s32.totalorder %s138, %s154
      %p156 = scmp.eq.s32.totalorder %s20, 0
      %p157 = por %p155, %p156
      %p158 = scmp.le.s32.totalorder 1, %s14
      %p159 = scmp.lt.s32.totalorder %s14, 5
      %p160 = pnand %p158, %p159
      %p161 = pneg %p160
      // Predicated region
      $region9: #{tpu_custom_call.1} parent=5 // pred_check
        _
      $region10: #{tpu_custom_call.1} parent=5 // pred_check_branch
        %163 = sbr.rel (%p160) target = $region12
      $region11: #{tpu_custom_call.1} parent=5 // pred_region
        %s164 = ssub.s32 %s14, 1
        // Predicated region
        $region13: #{tpu_custom_call.1} parent=11 // pred_check
          %p165 = pneg %p61
        $region14: #{tpu_custom_call.1} parent=11 // pred_check_branch
          %167 = sbr.rel (%p165) target = $region16
        $region15: #{tpu_custom_call.1} parent=11 // pred_region
          _
        $region16: #{tpu_custom_call.1} parent=11 // pred_fallthru
          _
        // Predicated region
        $region17: #{tpu_custom_call.1} parent=11 // pred_check
          %p168 = pneg %p82
        $region18: #{tpu_custom_call.1} parent=11 // pred_check_branch
          %170 = sbr.rel (%p168) target = $region20
        $region19: #{tpu_custom_call.1} parent=11 // pred_region
          _
        $region20: #{tpu_custom_call.1} parent=11 // pred_fallthru
          _
        // Predicated region
        $region21: #{tpu_custom_call.1} parent=11 // pred_check
          %p171 = pneg %p103
        $region22: #{tpu_custom_call.1} parent=11 // pred_check_branch
          %173 = sbr.rel (%p171) target = $region24
        $region23: #{tpu_custom_call.1} parent=11 // pred_region
          _
        $region24: #{tpu_custom_call.1} parent=11 // pred_fallthru
          _
        // Predicated region
        $region25: #{tpu_custom_call.1} parent=11 // pred_check
          %p174 = pneg %p124
        $region26: #{tpu_custom_call.1} parent=11 // pred_check_branch
          %176 = sbr.rel (%p174) target = $region28
        $region27: #{tpu_custom_call.1} parent=11 // pred_region
          _
        $region28: #{tpu_custom_call.1} parent=11 // pred_fallthru
          _
      $region12: #{tpu_custom_call.1} parent=5 // pred_fallthru
        _
      %p177 = scmp.lt.s32.totalorder %s14, 4
      // Predicated region
      $region29: #{tpu_custom_call.1} parent=5 // pred_check
        %p178 = pneg %p177
      $region30: #{tpu_custom_call.1} parent=5 // pred_check_branch
        %180 = sbr.rel (%p178) target = $region32
      $region31: #{tpu_custom_call.1} parent=5 // pred_region
        // Predicated region
        $region33: #{tpu_custom_call.1} parent=31 // pred_check
          %p181 = pneg %p34
        $region34: #{tpu_custom_call.1} parent=31 // pred_check_branch
          %183 = sbr.rel (%p181) target = $region36
        $region35: #{tpu_custom_call.1} parent=31 // pred_region
          %s184 = smul.u32 4, %s14
          %p185 = scmp.lt.s32.totalorder %s184, 15
          %s186 = scalar_select %p185, %s184, 15
          %s187 = smul.addr %s186, 8
          %s188 = scalar_lea.vmem %s0, %s187
          %s189 = smul.u32 4, %s14
        $region36: #{tpu_custom_call.1} parent=31 // pred_fallthru
          _
      $region32: #{tpu_custom_call.1} parent=5 // pred_fallthru
        _
      %p190 = scmp.le.s32.totalorder 1, %s14
      %p191 = scmp.lt.s32.totalorder %s14, 5
      %p192 = pnand %p190, %p191
      %p193 = pneg %p192
      // Predicated region
      $region37: #{tpu_custom_call.1} parent=5 // pred_check
        _
      $region38: #{tpu_custom_call.1} parent=5 // pred_check_branch
        %195 = sbr.rel (%p192) target = $region40
      $region39: #{tpu_custom_call.1} parent=5 // pred_region
        %s196 = ssub.s32 %s14, 1
        %s197 = smul.u32 4, %s19
        %p198 = scmp.lt.s32.totalorder %s197, 15
        %s199 = scalar_select %p198, %s197, 15
        %s200 = smul.addr %s199, 8
        %s201 = scalar_lea.vmem %s0, %s200
        %p202 = pneg %p40
        %p203 = pneg %p37
        %p204 = pneg %p61
        %p205 = pneg %p58
        %p206 = pneg %p82
        %p207 = pneg %p79
        %p208 = pneg %p103
        %p209 = pneg %p100
        %p210 = pneg %p124
        %p211 = pneg %p121
        %p212 = pneg %p150
        %p213 = pneg %p147
        %s214 = sand.u32 %s137, 1
        %s215 = scalar_lea.sflag [#allocation3], %s214
        %s216 = sand.u32 %s137, 1
        %s217 = smul.addr %s216, 32
        %s218 = scalar_lea.vmem [#allocation2], %s217
        %s219 = smul.u32 4, %s19
        %p220 = scmp.lt.s32.totalorder %s219, 15
        %s221 = scalar_select %p220, %s219, 15
        %s222 = smul.addr %s221, 8
        %s223 = scalar_lea.vmem %s0, %s222
        %s224 = smul.u32 4, %s19
        %s225 = smul.u32 4, %s19
        %v227 = vld [vmem:[%s223] sm:$0xff]
        %v228 = vld [vmem:[%s223 + $0x8] sm:$0xff]
        %v229 = vld [vmem:[%s223 + $0x10] sm:$0xff]
        %v230 = vld [vmem:[%s223 + $0x18] sm:$0xff]
        %v231 = vpack.c.bf16 %v228, %v227
        %v232 = vpack.c.bf16 %v230, %v229
        %v233 = vld [vmem:[%s1] sm:$0xf]
        %v234 = vld [vmem:[%s1 + $0x4] sm:$0xf]
        %v235 = vld [vmem:[%s1 + $0x8] sm:$0xf]
        %v236 = vld [vmem:[%s1 + $0xc] sm:$0xf]
        %v237 = vld [vmem:[%s1 + $0x10] sm:$0xf]
        %v238 = vld [vmem:[%s1 + $0x14] sm:$0xf]
        %v239 = vld [vmem:[%s1 + $0x18] sm:$0xf]
        %v240 = vld [vmem:[%s1 + $0x1c] sm:$0xf]
        %v241 = vld [vmem:[%s2] sm:$0x1]
        %v243 = vlaneseq
        %v244 = vshrl.u32 %v243, 7
        %v245 = vsub.s32 0, %v244
        %v246 = vrot.slane %v241, %v245
        %v256 = vunpack.c.l.b16 %v233
        %v257 = vunpack.c.l.b16 %v234
        %v258 = vunpack.c.l.b16 %v235
        %v259 = vunpack.c.l.b16 %v236
        %v260 = vunpack.c.l.b16 %v237
        %v261 = vunpack.c.l.b16 %v238
        %v262 = vunpack.c.l.b16 %v239
        %v263 = vunpack.c.l.b16 %v240
        %v264 = vpack.c.b16 %v257, %v256
        %v265 = vpack.c.b16 %v259, %v258
        %v266 = vpack.c.b16 %v261, %v260
        %v267 = vpack.c.b16 %v263, %v262
        %vm272 = vcmask 523264
        %v274 = vsel %vm272, %v231, 0
        %v277 = vsel %vm272, %v232, 0
        %279 = vmatprep.subr.bf16.mxu0 0
        %280 = vmatpush1.bf16.msra.mxu0 %v264
        %281 = vmatprep.subr.bf16.mxu0 0
        %282 = vmatpush1.bf16.msra.mxu0 %v265
        %283 = vmatprep.subr.bf16.mxu0 0
        %284 = vmatpush1.bf16.msra.mxu0 %v266
        %285 = vmatprep.subr.bf16.mxu0 0
        %286 = vmatpush1.bf16.msra.mxu0 %v267
        %287 = vmatprep.subr.bf16.mxu0 0
        %288 = vmatpush1.bf16.msra.mxu0 0
        %289 = vmatprep.subr.bf16.mxu0 0
        %290 = vmatpush1.bf16.msra.mxu0 0
        %291 = vmatprep.subr.bf16.mxu0 0
        %292 = vmatpush1.bf16.msra.mxu0 0
        %293 = vmatprep.subr.bf16.mxu0 0
        %294 = vmatpush1.bf16.msra.mxu0 0
        %295 = vmatprep.subr.bf16.mxu0 0
        %296 = vmatpush1.bf16.msra.mxu0 0
        %297 = vmatprep.subr.bf16.mxu0 0
        %298 = vmatpush1.bf16.msra.mxu0 0
        %299 = vmatprep.subr.bf16.mxu0 0
        %300 = vmatpush1.bf16.msra.mxu0 0
        %301 = vmatprep.subr.bf16.mxu0 0
        %302 = vmatpush1.bf16.msra.mxu0 0
        %303 = vmatprep.subr.bf16.mxu0 0
        %304 = vmatpush1.bf16.msra.mxu0 0
        %305 = vmatprep.subr.bf16.mxu0 0
        %306 = vmatpush1.bf16.msra.mxu0 0
        %307 = vmatprep.subr.bf16.mxu0 0
        %308 = vmatpush1.bf16.msra.mxu0 0
        %309 = vmatprep.subr.bf16.mxu0 0
        %310 = vmatpush1.bf16.msra.mxu0 0
        %311 = vmatprep.mubr.bf16.mxu0 0
        %312 = vmatmul.mubr.bf16.gmra.mrb[0].mxu0 %v274
        %v313 = vpop.f32.mrb[0].mxu0
        %v314 = vadd.f32 %v246, %v313
        %v315 = vpop.f32.mrb[0].mxu0
        %v316 = vpop.f32.mrb[0].mxu0
        %v317 = vadd.f32 %v246, %v316
        %v318 = vpop.f32.mrb[0].mxu0
        %319 = vmatprep.mubr.bf16.mxu0 0
        %320 = vmatmul.mubr.bf16.gmra.mrb[0].mxu0 %v277
        %v321 = vpop.f32.mrb[0].mxu0
        %v322 = vadd.f32 %v246, %v321
        %v323 = vpop.f32.mrb[0].mxu0
        %v324 = vpop.f32.mrb[0].mxu0
        %v325 = vadd.f32 %v246, %v324
        %v326 = vpop.f32.mrb[0].mxu0
        %327 = vdwg.mxu0
        %v328 = vmax.f32 %v314, 0.0
        %v329 = vmax.f32 %v317, 0.0
        %v330 = vmax.f32 %v322, 0.0
        %v331 = vmax.f32 %v325, 0.0
        %v332 = vpack.c.bf16 %v329, %v328
        %v333 = vpack.c.bf16 %v331, %v330
        %v334 = vld [vmem:[%s3] sm:$0xf]
        %v335 = vld [vmem:[%s3 + $0x4] sm:$0xf]
        %v336 = vld [vmem:[%s3 + $0x8] sm:$0xf]
        %v337 = vld [vmem:[%s3 + $0xc] sm:$0xf]
        %v338 = vld [vmem:[%s3 + $0x10] sm:$0xf]
        %v339 = vld [vmem:[%s3 + $0x14] sm:$0xf]
        %v340 = vld [vmem:[%s3 + $0x18] sm:$0xf]
        %v341 = vld [vmem:[%s3 + $0x1c] sm:$0xf]
        %v342 = vld [vmem:[%s3 + $0x20] sm:$0xf]
        %v343 = vld [vmem:[%s3 + $0x24] sm:$0xf]
        %v344 = vld [vmem:[%s3 + $0x28] sm:$0xf]
        %v345 = vld [vmem:[%s3 + $0x2c] sm:$0xf]
        %v346 = vld [vmem:[%s3 + $0x30] sm:$0xf]
        %v347 = vld [vmem:[%s3 + $0x34] sm:$0xf]
        %v348 = vld [vmem:[%s3 + $0x38] sm:$0xf]
        %v349 = vld [vmem:[%s3 + $0x3c] sm:$0xf]
        %v350 = vld [vmem:[%s4] sm:$0x1]
        %v352 = vlaneseq
        %v353 = vshrl.u32 %v352, 7
        %v354 = vsub.s32 0, %v353
        %v355 = vrot.slane %v350, %v354
        %v373 = vunpack.c.l.b16 %v334
        %v374 = vunpack.c.l.b16 %v335
        %v375 = vunpack.c.l.b16 %v336
        %v376 = vunpack.c.l.b16 %v337
        %v377 = vunpack.c.l.b16 %v338
        %v378 = vunpack.c.l.b16 %v339
        %v379 = vunpack.c.l.b16 %v340
        %v380 = vunpack.c.l.b16 %v341
        %v381 = vunpack.c.l.b16 %v342
        %v382 = vunpack.c.l.b16 %v343
        %v383 = vunpack.c.l.b16 %v344
        %v384 = vunpack.c.l.b16 %v345
        %v385 = vunpack.c.l.b16 %v346
        %v386 = vunpack.c.l.b16 %v347
        %v387 = vunpack.c.l.b16 %v348
        %v388 = vunpack.c.l.b16 %v349
        %v389 = vpack.c.b16 %v374, %v373
        %v390 = vpack.c.b16 %v376, %v375
        %v391 = vpack.c.b16 %v378, %v377
        %v392 = vpack.c.b16 %v380, %v379
        %v393 = vpack.c.b16 %v382, %v381
        %v394 = vpack.c.b16 %v384, %v383
        %v395 = vpack.c.b16 %v386, %v385
        %v396 = vpack.c.b16 %v388, %v387
        %405 = vmatprep.subr.bf16.mxu0 0
        %406 = vmatpush1.bf16.msra.mxu0 %v389
        %407 = vmatprep.subr.bf16.mxu0 0
        %408 = vmatpush1.bf16.msra.mxu0 %v390
        %409 = vmatprep.subr.bf16.mxu0 0
        %410 = vmatpush1.bf16.msra.mxu0 %v391
        %411 = vmatprep.subr.bf16.mxu0 0
        %412 = vmatpush1.bf16.msra.mxu0 %v392
        %413 = vmatprep.subr.bf16.mxu0 0
        %414 = vmatpush1.bf16.msra.mxu0 %v393
        %415 = vmatprep.subr.bf16.mxu0 0
        %416 = vmatpush1.bf16.msra.mxu0 %v394
        %417 = vmatprep.subr.bf16.mxu0 0
        %418 = vmatpush1.bf16.msra.mxu0 %v395
        %419 = vmatprep.subr.bf16.mxu0 0
        %420 = vmatpush1.bf16.msra.mxu0 %v396
        %421 = vmatprep.subr.bf16.mxu0 0
        %422 = vmatpush1.bf16.msra.mxu0 0
        %423 = vmatprep.subr.bf16.mxu0 0
        %424 = vmatpush1.bf16.msra.mxu0 0
        %425 = vmatprep.subr.bf16.mxu0 0
        %426 = vmatpush1.bf16.msra.mxu0 0
        %427 = vmatprep.subr.bf16.mxu0 0
        %428 = vmatpush1.bf16.msra.mxu0 0
        %429 = vmatprep.subr.bf16.mxu0 0
        %430 = vmatpush1.bf16.msra.mxu0 0
        %431 = vmatprep.subr.bf16.mxu0 0
        %432 = vmatpush1.bf16.msra.mxu0 0
        %433 = vmatprep.subr.bf16.mxu0 0
        %434 = vmatpush1.bf16.msra.mxu0 0
        %435 = vmatprep.subr.bf16.mxu0 0
        %436 = vmatpush1.bf16.msra.mxu0 0
        %437 = vmatprep.mubr.bf16.mxu0 0
        %438 = vmatmul.mubr.bf16.gmra.mrb[0].mxu0 %v332
        %v439 = vpop.f32.mrb[0].mxu0
        %v440 = vadd.f32 %v355, %v439
        %v441 = vpop.f32.mrb[0].mxu0
        %v442 = vpop.f32.mrb[0].mxu0
        %v443 = vadd.f32 %v355, %v442
        %v444 = vpop.f32.mrb[0].mxu0
        %445 = vmatprep.mubr.bf16.mxu0 0
        %446 = vmatmul.mubr.bf16.gmra.mrb[0].mxu0 %v333
        %v447 = vpop.f32.mrb[0].mxu0
        %v448 = vadd.f32 %v355, %v447
        %v449 = vpop.f32.mrb[0].mxu0
        %v450 = vpop.f32.mrb[0].mxu0
        %v451 = vadd.f32 %v355, %v450
        %v452 = vpop.f32.mrb[0].mxu0
        %453 = vdwg.mxu0
        %v454 = vmax.f32 %v440, 0.0
        %v455 = vmax.f32 %v443, 0.0
        %v456 = vmax.f32 %v448, 0.0
        %v457 = vmax.f32 %v451, 0.0
        %458 = vst [vmem:[%s218] sm:$0xff] %v454
        %459 = vst [vmem:[%s218 + $0x8] sm:$0xff] %v455
        %460 = vst [vmem:[%s218 + $0x10] sm:$0xff] %v456
        %461 = vst [vmem:[%s218 + $0x18] sm:$0xff] %v457
        %s462 = sand.u32 %s137, 1
        %s463 = scalar_lea.sflag [#allocation3], %s462
        %s464 = sand.u32 %s137, 1
        %s465 = smul.addr %s464, 32
        %s466 = scalar_lea.vmem [#allocation2], %s465
        // Predicated region
        $region41: #{tpu_custom_call.1} parent=39 // pred_check
          %p467 = pneg %p147
        $region42: #{tpu_custom_call.1} parent=39 // pred_check_branch
          %469 = sbr.rel (%p467) target = $region44
        $region43: #{tpu_custom_call.1} parent=39 // pred_region
          %s470 = smul.u32 4, %s19
          %s472 = ssub.s32 512, 512
          %473 = vsyncadd %s463, %s472
          %s474 = smul.addr %s470, 128
          %s475 = scalar_lea.hbm %s5, %s474
          %s476 = sshll.u32 %s466, 4
          %s477 = int_to_ptr.vmem [resolvable:$true] %s476
          %482 = dma.vmem_to_hbm [thread:$0]  %s477, 512, %s475, %s463, 128, 128, 8
        $region44: #{tpu_custom_call.1} parent=39 // pred_fallthru
          _
      $region40: #{tpu_custom_call.1} parent=5 // pred_fallthru
        _
      %p483 = scmp.le.s32.totalorder 2, %s14
      // Predicated region
      $region45: #{tpu_custom_call.1} parent=5 // pred_check
        %p484 = pneg %p483
      $region46: #{tpu_custom_call.1} parent=5 // pred_check_branch
        %486 = sbr.rel (%p484) target = $region48
      $region47: #{tpu_custom_call.1} parent=5 // pred_region
        %s487 = ssub.s32 %s14, 2
        // Predicated region
        $region49: #{tpu_custom_call.1} parent=47 // pred_check
          %p488 = pneg %p153
        $region50: #{tpu_custom_call.1} parent=47 // pred_check_branch
          %490 = sbr.rel (%p488) target = $region52
        $region51: #{tpu_custom_call.1} parent=47 // pred_region
          %s491 = sand.u32 %s138, 1
          %s492 = scalar_lea.sflag [#allocation3], %s491
          %s493 = sand.u32 %s138, 1
          %s494 = smul.addr %s493, 32
          %s495 = scalar_lea.vmem [#allocation2], %s494
          %496 = dma.done %s492, 512
        $region52: #{tpu_custom_call.1} parent=47 // pred_fallthru
          _
      $region48: #{tpu_custom_call.1} parent=5 // pred_fallthru
        _
    $region6: #{tpu_custom_call.1} parent=1 // loop_footer
      %s18 = sadd.s32 1, %s14
    $region7: #{tpu_custom_call.1} parent=1 // loop_footer_branch
      %13 = sbr.rel target = $region3
    $region8: #{tpu_custom_call.1} parent=1 // loop_exit
      _
    %497 = vsyncpa [#allocation3], 1
    %s498 = scalar_lea.sflag [#allocation3], 1
    %499 = vsyncpa %s498, 1

// kernel: tpu_custom_call.1
$region0: #{tpu_custom_call.1}
  #allocation0 [shape = 'u32[]', space=smem, size = 0x4, offset = 0x4, fixed_abs, tag = 'smem constant byte address 0x4 - core index']
  #allocation1 [shape = 'u32[144,128]{1,0:T(1,128)}', space=vmem, size = 0x12000, scoped, tag = 'internal scratch']
  %s0 = inlined_call_operand.vmem [shape: f32[128,64], index: 0, kind: input, shape index: {}]
  %s1 = inlined_call_operand.vmem [shape: bf16[64,128], index: 1, kind: input, shape index: {}]
  %s2 = inlined_call_operand.vmem [shape: f32[1,128], index: 2, kind: input, shape index: {}]
  %s3 = inlined_call_operand.vmem [shape: bf16[128,128], index: 3, kind: input, shape index: {}]
  %s4 = inlined_call_operand.vmem [shape: f32[1,128], index: 4, kind: input, shape index: {}]
  %s5 = inlined_call_operand.hbm [shape: f32[128,128], index: 5, kind: output, shape index: {}]
  %s6 = sld [smem:[#allocation0]]
  $region53: #{tpu_custom_call.1} parent=0
    _
  %s8 = ssub.s32 1, %s6
  %s9 = scalar_select 0, %s8, %s6
  $region1: #{tpu_custom_call.1} parent=0
    #allocation2 [shape = 'u8[32768]{0}', space=vmem, size = 0x8000, scoped, tag = 'output window, operand 0']
    #allocation3 [shape = 's32[2]{0}', space=sflag, size = 0x8, scoped, tag = 'scoped memory for tpu_custom_call.1']
    %10 = vsyncpa [#allocation3], 0
    %s11 = scalar_lea.sflag [#allocation3], 1
    %12 = vsyncpa %s11, 0
    loop: start=0, step=1, limit=6
    $region2: #{tpu_custom_call.1} parent=1 // loop_pre_header
      _
    $region3: #{tpu_custom_call.1} parent=1 // loop_header
      %s14 = sphi 0, %s18
      %p15 = scmp.ge.s32.totalorder %s14, 6
      %s24 = sphi 0, %s26
      %s27 = sphi 0, %s24
      %s28 = sphi 0, %s27
      %s44 = sphi 0, %s28
      %s48 = sphi 0, %s48
      %s50 = sphi 0, %s48
      %s51 = sphi 0, %s50
      %s65 = sphi 0, %s51
      %s69 = sphi 0, %s69
      %s71 = sphi 0, %s69
      %s72 = sphi 0, %s71
      %s86 = sphi 0, %s72
      %s90 = sphi 0, %s90
      %s92 = sphi 0, %s90
      %s93 = sphi 0, %s92
      %s107 = sphi 0, %s93
      %s111 = sphi 0, %s111
      %s113 = sphi 0, %s111
      %s114 = sphi 0, %s113
      %s128 = sphi 0, %s114
      %s134 = sphi 0, %s136
      %s137 = sphi 0, %s134
      %s138 = sphi 0, %s137
      %s154 = sphi 0, %s138
    $region4: #{tpu_custom_call.1} parent=1 // loop_header_branch
      %17 = sbr.rel (%p15) target = $region8
    $region5: #{tpu_custom_call.1} parent=1 // loop_body
      %s19 = ssub.s32 %s14, 1
      %s20 = ssub.s32 %s14, 2
      %s21 = sadd.s32 %s14, 1
      %s22 = ssub.s32 %s14, %s21
      %p23 = scmp.eq.s32.totalorder %s22, 0
      %s25 = sadd.s32 %s24, 1
      %s26 = scalar_select %p23, %s24, %s25
      %p29 = pneg %p23
      %p30 = scmp.eq.s32.totalorder %s14, 3
      %p31 = por %p29, %p30
      %p32 = scmp.ne.s32.totalorder %s24, %s27
      %p33 = scmp.eq.s32.totalorder %s14, 0
      %p34 = por %p32, %p33
      %p35 = scmp.ne.s32.totalorder %s24, %s27
      %p36 = scmp.eq.s32.totalorder %s19, 3
      %p37 = por %p35, %p36
      %p38 = scmp.ne.s32.totalorder %s27, %s28
      %p39 = scmp.eq.s32.totalorder %s19, 0
      %p40 = por %p38, %p39
      %p41 = scmp.ne.s32.totalorder %s27, %s28
      %p42 = scmp.eq.s32.totalorder %s20, 3
      %p43 = por %p41, %p42
      %p45 = scmp.ne.s32.totalorder %s28, %s44
      %p46 = scmp.eq.s32.totalorder %s20, 0
      %p47 = por %p45, %p46
      %s49 = sadd.s32 %s48, 1
      %p52 = scmp.eq.s32.totalorder %s14, 3
      %p53 = scmp.ne.s32.totalorder %s48, %s50
      %p54 = scmp.eq.s32.totalorder %s14, 0
      %p55 = por %p53, %p54
      %p56 = scmp.ne.s32.totalorder %s48, %s50
      %p57 = scmp.eq.s32.totalorder %s19, 3
      %p58 = por %p56, %p57
      %p59 = scmp.ne.s32.totalorder %s50, %s51
      %p60 = scmp.eq.s32.totalorder %s19, 0
      %p61 = por %p59, %p60
      %p62 = scmp.ne.s32.totalorder %s50, %s51
      %p63 = scmp.eq.s32.totalorder %s20, 3
      %p64 = por %p62, %p63
      %p66 = scmp.ne.s32.totalorder %s51, %s65
      %p67 = scmp.eq.s32.totalorder %s20, 0
      %p68 = por %p66, %p67
      %s70 = sadd.s32 %s69, 1
      %p73 = scmp.eq.s32.totalorder %s14, 3
      %p74 = scmp.ne.s32.totalorder %s69, %s71
      %p75 = scmp.eq.s32.totalorder %s14, 0
      %p76 = por %p74, %p75
      %p77 = scmp.ne.s32.totalorder %s69, %s71
      %p78 = scmp.eq.s32.totalorder %s19, 3
      %p79 = por %p77, %p78
      %p80 = scmp.ne.s32.totalorder %s71, %s72
      %p81 = scmp.eq.s32.totalorder %s19, 0
      %p82 = por %p80, %p81
      %p83 = scmp.ne.s32.totalorder %s71, %s72
      %p84 = scmp.eq.s32.totalorder %s20, 3
      %p85 = por %p83, %p84
      %p87 = scmp.ne.s32.totalorder %s72, %s86
      %p88 = scmp.eq.s32.totalorder %s20, 0
      %p89 = por %p87, %p88
      %s91 = sadd.s32 %s90, 1
      %p94 = scmp.eq.s32.totalorder %s14, 3
      %p95 = scmp.ne.s32.totalorder %s90, %s92
      %p96 = scmp.eq.s32.totalorder %s14, 0
      %p97 = por %p95, %p96
      %p98 = scmp.ne.s32.totalorder %s90, %s92
      %p99 = scmp.eq.s32.totalorder %s19, 3
      %p100 = por %p98, %p99
      %p101 = scmp.ne.s32.totalorder %s92, %s93
      %p102 = scmp.eq.s32.totalorder %s19, 0
      %p103 = por %p101, %p102
      %p104 = scmp.ne.s32.totalorder %s92, %s93
      %p105 = scmp.eq.s32.totalorder %s20, 3
      %p106 = por %p104, %p105
      %p108 = scmp.ne.s32.totalorder %s93, %s107
      %p109 = scmp.eq.s32.totalorder %s20, 0
      %p110 = por %p108, %p109
      %s112 = sadd.s32 %s111, 1
      %p115 = scmp.eq.s32.totalorder %s14, 3
      %p116 = scmp.ne.s32.totalorder %s111, %s113
      %p117 = scmp.eq.s32.totalorder %s14, 0
      %p118 = por %p116, %p117
      %p119 = scmp.ne.s32.totalorder %s111, %s113
      %p120 = scmp.eq.s32.totalorder %s19, 3
      %p121 = por %p119, %p120
      %p122 = scmp.ne.s32.totalorder %s113, %s114
      %p123 = scmp.eq.s32.totalorder %s19, 0
      %p124 = por %p122, %p123
      %p125 = scmp.ne.s32.totalorder %s113, %s114
      %p126 = scmp.eq.s32.totalorder %s20, 3
      %p127 = por %p125, %p126
      %p129 = scmp.ne.s32.totalorder %s114, %s128
      %p130 = scmp.eq.s32.totalorder %s20, 0
      %p131 = por %p129, %p130
      %s132 = ssub.s32 %s14, %s21
      %p133 = scmp.eq.s32.totalorder %s132, 0
      %s135 = sadd.s32 %s134, 1
      %s136 = scalar_select %p133, %s134, %s135
      %p139 = pneg %p133
      %p140 = scmp.eq.s32.totalorder %s14, 3
      %p141 = por %p139, %p140
      %p142 = scmp.ne.s32.totalorder %s134, %s137
      %p143 = scmp.eq.s32.totalorder %s14, 0
      %p144 = por %p142, %p143
      %p145 = scmp.ne.s32.totalorder %s134, %s137
      %p146 = scmp.eq.s32.totalorder %s19, 3
      %p147 = por %p145, %p146
      %p148 = scmp.ne.s32.totalorder %s137, %s138
      %p149 = scmp.eq.s32.totalorder %s19, 0
      %p150 = por %p148, %p149
      %p151 = scmp.ne.s32.totalorder %s137, %s138
      %p152 = scmp.eq.s32.totalorder %s20, 3
      %p153 = por %p151, %p152
      %p155 = scmp.ne.s32.totalorder %s138, %s154
      %p156 = scmp.eq.s32.totalorder %s20, 0
      %p157 = por %p155, %p156
      %p158 = scmp.le.s32.totalorder 1, %s14
      %p159 = scmp.lt.s32.totalorder %s14, 5
      %p160 = pnand %p158, %p159
      %p161 = pneg %p160
      // Predicated region
      $region9: #{tpu_custom_call.1} parent=5 // pred_check
        _
      $region10: #{tpu_custom_call.1} parent=5 // pred_check_branch
        %163 = sbr.rel (%p160) target = $region12
      $region11: #{tpu_custom_call.1} parent=5 // pred_region
        %s164 = ssub.s32 %s14, 1
        // Predicated region
        $region13: #{tpu_custom_call.1} parent=11 // pred_check
          %p165 = pneg %p61
        $region14: #{tpu_custom_call.1} parent=11 // pred_check_branch
          %167 = sbr.rel (%p165) target = $region16
        $region15: #{tpu_custom_call.1} parent=11 // pred_region
          _
        $region16: #{tpu_custom_call.1} parent=11 // pred_fallthru
          _
        // Predicated region
        $region17: #{tpu_custom_call.1} parent=11 // pred_check
          %p168 = pneg %p82
        $region18: #{tpu_custom_call.1} parent=11 // pred_check_branch
          %170 = sbr.rel (%p168) target = $region20
        $region19: #{tpu_custom_call.1} parent=11 // pred_region
          _
        $region20: #{tpu_custom_call.1} parent=11 // pred_fallthru
          _
        // Predicated region
        $region21: #{tpu_custom_call.1} parent=11 // pred_check
          %p171 = pneg %p103
        $region22: #{tpu_custom_call.1} parent=11 // pred_check_branch
          %173 = sbr.rel (%p171) target = $region24
        $region23: #{tpu_custom_call.1} parent=11 // pred_region
          _
        $region24: #{tpu_custom_call.1} parent=11 // pred_fallthru
          _
        // Predicated region
        $region25: #{tpu_custom_call.1} parent=11 // pred_check
          %p174 = pneg %p124
        $region26: #{tpu_custom_call.1} parent=11 // pred_check_branch
          %176 = sbr.rel (%p174) target = $region28
        $region27: #{tpu_custom_call.1} parent=11 // pred_region
          _
        $region28: #{tpu_custom_call.1} parent=11 // pred_fallthru
          _
      $region12: #{tpu_custom_call.1} parent=5 // pred_fallthru
        _
      %p177 = scmp.lt.s32.totalorder %s14, 4
      // Predicated region
      $region29: #{tpu_custom_call.1} parent=5 // pred_check
        %p178 = pneg %p177
      $region30: #{tpu_custom_call.1} parent=5 // pred_check_branch
        %180 = sbr.rel (%p178) target = $region32
      $region31: #{tpu_custom_call.1} parent=5 // pred_region
        // Predicated region
        $region33: #{tpu_custom_call.1} parent=31 // pred_check
          %p181 = pneg %p34
        $region34: #{tpu_custom_call.1} parent=31 // pred_check_branch
          %183 = sbr.rel (%p181) target = $region36
        $region35: #{tpu_custom_call.1} parent=31 // pred_region
          %s184 = smul.u32 4, %s14
          %p185 = scmp.lt.s32.totalorder %s184, 15
          %s186 = scalar_select %p185, %s184, 15
          %s187 = smul.addr %s186, 8
          %s188 = scalar_lea.vmem %s0, %s187
          %s189 = smul.u32 4, %s14
        $region36: #{tpu_custom_call.1} parent=31 // pred_fallthru
          _
      $region32: #{tpu_custom_call.1} parent=5 // pred_fallthru
        _
      %p190 = scmp.le.s32.totalorder 1, %s14
      %p191 = scmp.lt.s32.totalorder %s14, 5
      %p192 = pnand %p190, %p191
      %p193 = pneg %p192
      // Predicated region
      $region37: #{tpu_custom_call.1} parent=5 // pred_check
        _
      $region38: #{tpu_custom_call.1} parent=5 // pred_check_branch
        %195 = sbr.rel (%p192) target = $region40
      $region39: #{tpu_custom_call.1} parent=5 // pred_region
        %s196 = ssub.s32 %s14, 1
        %s197 = smul.u32 4, %s19
        %p198 = scmp.lt.s32.totalorder %s197, 15
        %s199 = scalar_select %p198, %s197, 15
        %s200 = smul.addr %s199, 8
        %s201 = scalar_lea.vmem %s0, %s200
        %p202 = pneg %p40
        %p203 = pneg %p37
        %p204 = pneg %p61
        %p205 = pneg %p58
        %p206 = pneg %p82
        %p207 = pneg %p79
        %p208 = pneg %p103
        %p209 = pneg %p100
        %p210 = pneg %p124
        %p211 = pneg %p121
        %p212 = pneg %p150
        %p213 = pneg %p147
        %s214 = sand.u32 %s137, 1
        %s215 = scalar_lea.sflag [#allocation3], %s214
        %s216 = sand.u32 %s137, 1
        %s217 = smul.addr %s216, 32
        %s218 = scalar_lea.vmem [#allocation2], %s217
        %s219 = smul.u32 4, %s19
        %p220 = scmp.lt.s32.totalorder %s219, 15
        %s221 = scalar_select %p220, %s219, 15
        %s222 = smul.addr %s221, 8
        %s223 = scalar_lea.vmem %s0, %s222
        %s224 = smul.u32 4, %s19
        %s225 = smul.u32 4, %s19
        %v227 = vld [vmem:[%s223] sm:$0xff]
        %v228 = vld [vmem:[%s223 + $0x8] sm:$0xff]
        %v229 = vld [vmem:[%s223 + $0x10] sm:$0xff]
        %v230 = vld [vmem:[%s223 + $0x18] sm:$0xff]
        %v231 = vpack.c.bf16 %v228, %v227
        %v232 = vpack.c.bf16 %v230, %v229
        %v233 = vld [vmem:[%s1] sm:$0xf]
        %v234 = vld [vmem:[%s1 + $0x4] sm:$0xf]
        %v235 = vld [vmem:[%s1 + $0x8] sm:$0xf]
        %v236 = vld [vmem:[%s1 + $0xc] sm:$0xf]
        %v237 = vld [vmem:[%s1 + $0x10] sm:$0xf]
        %v238 = vld [vmem:[%s1 + $0x14] sm:$0xf]
        %v239 = vld [vmem:[%s1 + $0x18] sm:$0xf]
        %v240 = vld [vmem:[%s1 + $0x1c] sm:$0xf]
        %v241 = vld [vmem:[%s2] sm:$0x1]
        %v243 = vlaneseq
        %v244 = vshrl.u32 %v243, 7
        %v245 = vsub.s32 0, %v244
        %v246 = vrot.slane %v241, %v245
        %v256 = vunpack.c.l.b16 %v233
        %v257 = vunpack.c.l.b16 %v234
        %v258 = vunpack.c.l.b16 %v235
        %v259 = vunpack.c.l.b16 %v236
        %v260 = vunpack.c.l.b16 %v237
        %v261 = vunpack.c.l.b16 %v238
        %v262 = vunpack.c.l.b16 %v239
        %v263 = vunpack.c.l.b16 %v240
        %v264 = vpack.c.b16 %v257, %v256
        %v265 = vpack.c.b16 %v259, %v258
        %v266 = vpack.c.b16 %v261, %v260
        %v267 = vpack.c.b16 %v263, %v262
        %vm272 = vcmask 523264
        %v274 = vsel %vm272, %v231, 0
        %v277 = vsel %vm272, %v232, 0
        %279 = vmatprep.subr.bf16.mxu0 0
        %280 = vmatpush1.bf16.msra.mxu0 %v264
        %281 = vmatprep.subr.bf16.mxu0 0
        %282 = vmatpush1.bf16.msra.mxu0 %v265
        %283 = vmatprep.subr.bf16.mxu0 0
        %284 = vmatpush1.bf16.msra.mxu0 %v266
        %285 = vmatprep.subr.bf16.mxu0 0
        %286 = vmatpush1.bf16.msra.mxu0 %v267
        %287 = vmatprep.subr.bf16.mxu0 0
        %288 = vmatpush1.bf16.msra.mxu0 0
        %289 = vmatprep.subr.bf16.mxu0 0
        %290 = vmatpush1.bf16.msra.mxu0 0
        %291 = vmatprep.subr.bf16.mxu0 0
        %292 = vmatpush1.bf16.msra.mxu0 0
        %293 = vmatprep.subr.bf16.mxu0 0
        %294 = vmatpush1.bf16.msra.mxu0 0
        %295 = vmatprep.subr.bf16.mxu0 0
        %296 = vmatpush1.bf16.msra.mxu0 0
        %297 = vmatprep.subr.bf16.mxu0 0
        %298 = vmatpush1.bf16.msra.mxu0 0
        %299 = vmatprep.subr.bf16.mxu0 0
        %300 = vmatpush1.bf16.msra.mxu0 0
        %301 = vmatprep.subr.bf16.mxu0 0
        %302 = vmatpush1.bf16.msra.mxu0 0
        %303 = vmatprep.subr.bf16.mxu0 0
        %304 = vmatpush1.bf16.msra.mxu0 0
        %305 = vmatprep.subr.bf16.mxu0 0
        %306 = vmatpush1.bf16.msra.mxu0 0
        %307 = vmatprep.subr.bf16.mxu0 0
        %308 = vmatpush1.bf16.msra.mxu0 0
        %309 = vmatprep.subr.bf16.mxu0 0
        %310 = vmatpush1.bf16.msra.mxu0 0
        %311 = vmatprep.mubr.bf16.mxu0 0
        %312 = vmatmul.mubr.bf16.gmra.mrb[0].mxu0 %v274
        %v313 = vpop.f32.mrb[0].mxu0
        %v314 = vadd.f32 %v246, %v313
        %v315 = vpop.f32.mrb[0].mxu0
        %v316 = vpop.f32.mrb[0].mxu0
        %v317 = vadd.f32 %v246, %v316
        %v318 = vpop.f32.mrb[0].mxu0
        %319 = vmatprep.mubr.bf16.mxu0 0
        %320 = vmatmul.mubr.bf16.gmra.mrb[0].mxu0 %v277
        %v321 = vpop.f32.mrb[0].mxu0
        %v322 = vadd.f32 %v246, %v321
        %v323 = vpop.f32.mrb[0].mxu0
        %v324 = vpop.f32.mrb[0].mxu0
        %v325 = vadd.f32 %v246, %v324
        %v326 = vpop.f32.mrb[0].mxu0
        %327 = vdwg.mxu0
        %v328 = vmax.f32 %v314, 0.0
        %v329 = vmax.f32 %v317, 0.0
        %v330 = vmax.f32 %v322, 0.0
        %v331 = vmax.f32 %v325, 0.0
        %v332 = vpack.c.bf16 %v329, %v328
        %v333 = vpack.c.bf16 %v331, %v330
        %v334 = vld [vmem:[%s3] sm:$0xf]
        %v335 = vld [vmem:[%s3 + $0x4] sm:$0xf]
        %v336 = vld [vmem:[%s3 + $0x8] sm:$0xf]
        %v337 = vld [vmem:[%s3 + $0xc] sm:$0xf]
        %v338 = vld [vmem:[%s3 + $0x10] sm:$0xf]
        %v339 = vld [vmem:[%s3 + $0x14] sm:$0xf]
        %v340 = vld [vmem:[%s3 + $0x18] sm:$0xf]
        %v341 = vld [vmem:[%s3 + $0x1c] sm:$0xf]
        %v342 = vld [vmem:[%s3 + $0x20] sm:$0xf]
        %v343 = vld [vmem:[%s3 + $0x24] sm:$0xf]
        %v344 = vld [vmem:[%s3 + $0x28] sm:$0xf]
        %v345 = vld [vmem:[%s3 + $0x2c] sm:$0xf]
        %v346 = vld [vmem:[%s3 + $0x30] sm:$0xf]
        %v347 = vld [vmem:[%s3 + $0x34] sm:$0xf]
        %v348 = vld [vmem:[%s3 + $0x38] sm:$0xf]
        %v349 = vld [vmem:[%s3 + $0x3c] sm:$0xf]
        %v350 = vld [vmem:[%s4] sm:$0x1]
        %v352 = vlaneseq
        %v353 = vshrl.u32 %v352, 7
        %v354 = vsub.s32 0, %v353
        %v355 = vrot.slane %v350, %v354
        %v373 = vunpack.c.l.b16 %v334
        %v374 = vunpack.c.l.b16 %v335
        %v375 = vunpack.c.l.b16 %v336
        %v376 = vunpack.c.l.b16 %v337
        %v377 = vunpack.c.l.b16 %v338
        %v378 = vunpack.c.l.b16 %v339
        %v379 = vunpack.c.l.b16 %v340
        %v380 = vunpack.c.l.b16 %v341
        %v381 = vunpack.c.l.b16 %v342
        %v382 = vunpack.c.l.b16 %v343
        %v383 = vunpack.c.l.b16 %v344
        %v384 = vunpack.c.l.b16 %v345
        %v385 = vunpack.c.l.b16 %v346
        %v386 = vunpack.c.l.b16 %v347
        %v387 = vunpack.c.l.b16 %v348
        %v388 = vunpack.c.l.b16 %v349
        %v389 = vpack.c.b16 %v374, %v373
        %v390 = vpack.c.b16 %v376, %v375
        %v391 = vpack.c.b16 %v378, %v377
        %v392 = vpack.c.b16 %v380, %v379
        %v393 = vpack.c.b16 %v382, %v381
        %v394 = vpack.c.b16 %v384, %v383
        %v395 = vpack.c.b16 %v386, %v385
        %v396 = vpack.c.b16 %v388, %v387
        %405 = vmatprep.subr.bf16.mxu0 0
        %406 = vmatpush1.bf16.msra.mxu0 %v389
        %407 = vmatprep.subr.bf16.mxu0 0
        %408 = vmatpush1.bf16.msra.mxu0 %v390
        %409 = vmatprep.subr.bf16.mxu0 0
        %410 = vmatpush1.bf16.msra.mxu0 %v391
        %411 = vmatprep.subr.bf16.mxu0 0
        %412 = vmatpush1.bf16.msra.mxu0 %v392
        %413 = vmatprep.subr.bf16.mxu0 0
        %414 = vmatpush1.bf16.msra.mxu0 %v393
        %415 = vmatprep.subr.bf16.mxu0 0
        %416 = vmatpush1.bf16.msra.mxu0 %v394
        %417 = vmatprep.subr.bf16.mxu0 0
        %418 = vmatpush1.bf16.msra.mxu0 %v395
        %419 = vmatprep.subr.bf16.mxu0 0
        %420 = vmatpush1.bf16.msra.mxu0 %v396
        %421 = vmatprep.subr.bf16.mxu0 0
        %422 = vmatpush1.bf16.msra.mxu0 0
        %423 = vmatprep.subr.bf16.mxu0 0
        %424 = vmatpush1.bf16.msra.mxu0 0
        %425 = vmatprep.subr.bf16.mxu0 0
        %426 = vmatpush1.bf16.msra.mxu0 0
        %427 = vmatprep.subr.bf16.mxu0 0
        %428 = vmatpush1.bf16.msra.mxu0 0
        %429 = vmatprep.subr.bf16.mxu0 0
        %430 = vmatpush1.bf16.msra.mxu0 0
        %431 = vmatprep.subr.bf16.mxu0 0
        %432 = vmatpush1.bf16.msra.mxu0 0
        %433 = vmatprep.subr.bf16.mxu0 0
        %434 = vmatpush1.bf16.msra.mxu0 0
        %435 = vmatprep.subr.bf16.mxu0 0
        %436 = vmatpush1.bf16.msra.mxu0 0
        %437 = vmatprep.mubr.bf16.mxu0 0
        %438 = vmatmul.mubr.bf16.gmra.mrb[0].mxu0 %v332
        %v439 = vpop.f32.mrb[0].mxu0
        %v440 = vadd.f32 %v355, %v439
        %v441 = vpop.f32.mrb[0].mxu0
        %v442 = vpop.f32.mrb[0].mxu0
        %v443 = vadd.f32 %v355, %v442
        %v444 = vpop.f32.mrb[0].mxu0
        %445 = vmatprep.mubr.bf16.mxu0 0
        %446 = vmatmul.mubr.bf16.gmra.mrb[0].mxu0 %v333
        %v447 = vpop.f32.mrb[0].mxu0
        %v448 = vadd.f32 %v355, %v447
        %v449 = vpop.f32.mrb[0].mxu0
        %v450 = vpop.f32.mrb[0].mxu0
        %v451 = vadd.f32 %v355, %v450
        %v452 = vpop.f32.mrb[0].mxu0
        %453 = vdwg.mxu0
        %v454 = vmax.f32 %v440, 0.0
        %v455 = vmax.f32 %v443, 0.0
        %v456 = vmax.f32 %v448, 0.0
        %v457 = vmax.f32 %v451, 0.0
        %458 = vst [vmem:[%s218] sm:$0xff] %v454
        %459 = vst [vmem:[%s218 + $0x8] sm:$0xff] %v455
        %460 = vst [vmem:[%s218 + $0x10] sm:$0xff] %v456
        %461 = vst [vmem:[%s218 + $0x18] sm:$0xff] %v457
        %s462 = sand.u32 %s137, 1
        %s463 = scalar_lea.sflag [#allocation3], %s462
        %s464 = sand.u32 %s137, 1
        %s465 = smul.addr %s464, 32
        %s466 = scalar_lea.vmem [#allocation2], %s465
        // Predicated region
        $region41: #{tpu_custom_call.1} parent=39 // pred_check
          %p467 = pneg %p147
        $region42: #{tpu_custom_call.1} parent=39 // pred_check_branch
          %469 = sbr.rel (%p467) target = $region44
        $region43: #{tpu_custom_call.1} parent=39 // pred_region
          %s470 = smul.u32 4, %s19
          %s472 = ssub.s32 512, 512
          %473 = vsyncadd %s463, %s472
          %s474 = smul.addr %s470, 128
          %s475 = scalar_lea.hbm %s5, %s474
          %s476 = sshll.u32 %s466, 4
          %s477 = int_to_ptr.vmem [resolvable:$true] %s476
          %482 = dma.vmem_to_hbm [thread:$0]  %s477, 512, %s475, %s463, 128, 128, 8
        $region44: #{tpu_custom_call.1} parent=39 // pred_fallthru
          _
      $region40: #{tpu_custom_call.1} parent=5 // pred_fallthru
        _
      %p483 = scmp.le.s32.totalorder 2, %s14
      // Predicated region
      $region45: #{tpu_custom_call.1} parent=5 // pred_check
        %p484 = pneg %p483
      $region46: #{tpu_custom_call.1} parent=5 // pred_check_branch
        %486 = sbr.rel (%p484) target = $region48
      $region47: #{tpu_custom_call.1} parent=5 // pred_region
        %s487 = ssub.s32 %s14, 2
        // Predicated region
        $region49: #{tpu_custom_call.1} parent=47 // pred_check
          %p488 = pneg %p153
        $region50: #{tpu_custom_call.1} parent=47 // pred_check_branch
          %490 = sbr.rel (%p488) target = $region52
        $region51: #{tpu_custom_call.1} parent=47 // pred_region
          %s491 = sand.u32 %s138, 1
          %s492 = scalar_lea.sflag [#allocation3], %s491
          %s493 = sand.u32 %s138, 1
          %s494 = smul.addr %s493, 32
          %s495 = scalar_lea.vmem [#allocation2], %s494
          %496 = dma.done %s492, 512
        $region52: #{tpu_custom_call.1} parent=47 // pred_fallthru
          _
      $region48: #{tpu_custom_call.1} parent=5 // pred_fallthru
        _
    $region6: #{tpu_custom_call.1} parent=1 // loop_footer
      %s18 = sadd.s32 1, %s14
    $region7: #{tpu_custom_call.1} parent=1 // loop_footer_branch
      %13 = sbr.rel target = $region3
    $region8: #{tpu_custom_call.1} parent=1 // loop_exit
      _
    %497 = vsyncpa [#allocation3], 1
    %s498 = scalar_lea.sflag [#allocation3], 1
    %499 = vsyncpa %s498, 1

</llo_original>
